<compile_context>
chip_gen: v6e
topology: v6e:2x2x1
jax: 0.10.0
libtpu: 0.0.40
codegen_flags: <defaults>
</compile_context>

<pallas_src>
import functools

import jax
import jax.numpy as jnp
from jax.experimental import pallas as pl
from jax.experimental.pallas import tpu as pltpu


def _mlp_kernel(x_ref, w1_ref, b1_ref, w2_ref, b2_ref, w3_ref, b3_ref, o_ref):
    x = x_ref[...]

    # fc1 + tanh
    z1 = jnp.dot(x, w1_ref[...], preferred_element_type=jnp.float32) + b1_ref[...]
    a1 = jnp.tanh(z1)

    # fc2 + tanh
    z2 = jnp.dot(a1, w2_ref[...], preferred_element_type=jnp.float32) + b2_ref[...]
    a2 = jnp.tanh(z2)

    # fc3
    z3 = jnp.dot(a2, w3_ref[...], preferred_element_type=jnp.float32) + b3_ref[...]

    # softmax over dim=1 (classes), numerically stable; reciprocal on the EUP.
    m = jnp.max(z3, axis=-1, keepdims=True)
    e = jnp.exp(z3 - m)
    denom = jnp.sum(e, axis=-1, keepdims=True)
    o_ref[...] = (e * pl.reciprocal(denom, approx=True)).astype(o_ref.dtype)


def prepare_params(params):
    """One-time prep OUTSIDE the hot path: PyTorch [out,in] -> [in,out], b -> [1,out]."""
    prepared = {
        "w1t": jnp.asarray(params["w1"]).T,
        "b1r": jnp.asarray(params["b1"])[None, :],
        "w2t": jnp.asarray(params["w2"]).T,
        "b2r": jnp.asarray(params["b2"])[None, :],
        "w3t": jnp.asarray(params["w3"]).T,
        "b3r": jnp.asarray(params["b3"])[None, :],
    }
    # Materialize now so the transposes are paid exactly once, not per forward.
    return jax.tree_util.tree_map(lambda a: jax.block_until_ready(jnp.asarray(a)),
                                  prepared)


@functools.partial(jax.jit, static_argnames=("block_b",))
def net_forward(x, prepared, block_b: int = 256):
    """x: [B, input_size] float32.  prepared: output of prepare_params()."""
    w1t, b1r = prepared["w1t"], prepared["b1r"]
    w2t, b2r = prepared["w2t"], prepared["b2r"]
    w3t, b3r = prepared["w3t"], prepared["b3r"]

    B, in_dim = x.shape
    num_classes = w3t.shape[1]

    # Batch tile: multiple of 8 (f32 sublane), capped at block_b (kept modest
    # so it also fits v7x's 64 MiB VMEM with double buffering).
    tb = min(block_b, max(8, ((B + 7) // 8) * 8))
    b_pad = pl.cdiv(B, tb) * tb
    if b_pad != B:
        x = jnp.pad(x, ((0, b_pad - B), (0, 0)))

    # Weights / biases: grid-invariant full blocks -> stay resident in VMEM.
    const = lambda a: pl.BlockSpec(a.shape, lambda i, _nd=a.ndim: (0,) * _nd)

    out = pl.pallas_call(
        _mlp_kernel,
        out_shape=jax.ShapeDtypeStruct((b_pad, num_classes), jnp.float32),
        grid=(b_pad // tb,),
        in_specs=[
            pl.BlockSpec((tb, in_dim), lambda i: (i, 0)),
            const(w1t), const(b1r),
            const(w2t), const(b2r),
            const(w3t), const(b3r),
        ],
        out_specs=pl.BlockSpec((tb, num_classes), lambda i: (i, 0)),
        compiler_params=pltpu.CompilerParams(
            dimension_semantics=("parallel",),
        ),
    )(x, w1t, b1r, w2t, b2r, w3t, b3r)

    return out[:B]


def init_params(key, input_size, hidden1, hidden2, num_classes):
    """Deterministic init mimicking torch.nn.Linear default (uniform +-1/sqrt(fan_in))."""
    ks = jax.random.split(key, 6)

    def linear(kw, kb, fan_in, fan_out):
        bound = 1.0 / jnp.sqrt(fan_in)
        w = jax.random.uniform(kw, (fan_out, fan_in), jnp.float32, -bound, bound)
        b = jax.random.uniform(kb, (fan_out,), jnp.float32, -bound, bound)
        return w, b

    w1, b1 = linear(ks[0], ks[1], input_size, hidden1)
    w2, b2 = linear(ks[2], ks[3], hidden1, hidden2)
    w3, b3 = linear(ks[4], ks[5], hidden2, num_classes)
    return {"w1": w1, "b1": b1, "w2": w2, "b2": b2, "w3": w3, "b3": b3}


def reference_forward(x, p):
    z1 = x @ p["w1"].T + p["b1"]
    a1 = jnp.tanh(z1)
    z2 = a1 @ p["w2"].T + p["b2"]
    a2 = jnp.tanh(z2)
    z3 = a2 @ p["w3"].T + p["b3"]
    return jax.nn.softmax(z3, axis=1)


if __name__ == "__main__":
    key = jax.random.PRNGKey(0)
    k_x, k_p = jax.random.split(key)

    batch, input_size, hidden1, hidden2, num_classes = 8, 16, 32, 32, 8
    x = jax.random.normal(k_x, (batch, input_size), jnp.float32)
    params = init_params(k_p, input_size, hidden1, hidden2, num_classes)

    prepared = prepare_params(params)          # one-time, outside the hot path

    out = net_forward(x, prepared)
    out = jax.block_until_ready(out)

    ref = reference_forward(x, params)
    assert out.shape == (batch, num_classes)
    # approx=True reciprocal -> ~1e-3 relative accuracy on the softmax output.
    assert jnp.allclose(out, ref, atol=2e-3, rtol=2e-3), "mismatch vs reference"
    # Rows should still sum to ~1.
    assert jnp.allclose(jnp.sum(out, axis=1), 1.0, atol=2e-3)

    print("KERNEL_OK")
</pallas_src>

<mosaic_0001>
module attributes {stable_mosaic.version = 11 : i64} {
  func.func @_mlp_kernel(%arg0: i32, %arg1: memref<8x16xf32, #tpu.memory_space<vmem>>, %arg2: memref<16x32xf32, #tpu.memory_space<vmem>>, %arg3: memref<1x32xf32, #tpu.memory_space<vmem>>, %arg4: memref<32x32xf32, #tpu.memory_space<vmem>>, %arg5: memref<1x32xf32, #tpu.memory_space<vmem>>, %arg6: memref<32x8xf32, #tpu.memory_space<vmem>>, %arg7: memref<1x8xf32, #tpu.memory_space<vmem>>, %arg8: memref<8x8xf32, #tpu.memory_space<vmem>>) attributes {dimension_semantics = [#tpu.dimension_semantics<parallel>], iteration_bounds = array<i64: 1>, scalar_prefetch = 0 : i64, scratch_operands = 0 : i64, tpu.core_type = #tpu.core_type<tc>, window_params = [{transform_indices = @transform_0, window_bounds = array<i64: 8, 16>}, {pipeline_mode = #tpu.pipeline_mode<synchronous>, transform_indices = @transform_1, window_bounds = array<i64: 16, 32>}, {pipeline_mode = #tpu.pipeline_mode<synchronous>, transform_indices = @transform_2, window_bounds = array<i64: 1, 32>}, {pipeline_mode = #tpu.pipeline_mode<synchronous>, transform_indices = @transform_3, window_bounds = array<i64: 32, 32>}, {pipeline_mode = #tpu.pipeline_mode<synchronous>, transform_indices = @transform_4, window_bounds = array<i64: 1, 32>}, {pipeline_mode = #tpu.pipeline_mode<synchronous>, transform_indices = @transform_5, window_bounds = array<i64: 32, 8>}, {pipeline_mode = #tpu.pipeline_mode<synchronous>, transform_indices = @transform_6, window_bounds = array<i64: 1, 8>}, {transform_indices = @transform_7, window_bounds = array<i64: 8, 8>}]} {
    %c0 = arith.constant 0 : index
    %c0_0 = arith.constant 0 : index
    %0 = vector.load %arg1[%c0, %c0_0] : memref<8x16xf32, #tpu.memory_space<vmem>>, vector<8x16xf32>
    %c0_1 = arith.constant 0 : index
    %c0_2 = arith.constant 0 : index
    %1 = vector.load %arg2[%c0_1, %c0_2] : memref<16x32xf32, #tpu.memory_space<vmem>>, vector<16x32xf32>
    %cst = arith.constant dense<0.000000e+00> : vector<8x32xf32>
    %2 = tpu.matmul %0, %1, %cst {dimension_numbers = #tpu.dot_dimension_numbers<[1], [0], [0], [1], [0, 0, 1, 1], [], []>} : vector<8x16xf32>, vector<16x32xf32>, vector<8x32xf32> -> vector<8x32xf32>
    %c0_3 = arith.constant 0 : index
    %c0_4 = arith.constant 0 : index
    %3 = vector.load %arg3[%c0_3, %c0_4] : memref<1x32xf32, #tpu.memory_space<vmem>>, vector<1x32xf32>
    %4 = vector.broadcast %3 : vector<1x32xf32> to vector<8x32xf32>
    %5 = arith.addf %2, %4 : vector<8x32xf32>
    %6 = math.tanh %5 : vector<8x32xf32>
    %c0_5 = arith.constant 0 : index
    %c0_6 = arith.constant 0 : index
    %7 = vector.load %arg4[%c0_5, %c0_6] : memref<32x32xf32, #tpu.memory_space<vmem>>, vector<32x32xf32>
    %cst_7 = arith.constant dense<0.000000e+00> : vector<8x32xf32>
    %8 = tpu.matmul %6, %7, %cst_7 {dimension_numbers = #tpu.dot_dimension_numbers<[1], [0], [0], [1], [0, 0, 1, 1], [], []>} : vector<8x32xf32>, vector<32x32xf32>, vector<8x32xf32> -> vector<8x32xf32>
    %c0_8 = arith.constant 0 : index
    %c0_9 = arith.constant 0 : index
    %9 = vector.load %arg5[%c0_8, %c0_9] : memref<1x32xf32, #tpu.memory_space<vmem>>, vector<1x32xf32>
    %10 = vector.broadcast %9 : vector<1x32xf32> to vector<8x32xf32>
    %11 = arith.addf %8, %10 : vector<8x32xf32>
    %12 = math.tanh %11 : vector<8x32xf32>
    %c0_10 = arith.constant 0 : index
    %c0_11 = arith.constant 0 : index
    %13 = vector.load %arg6[%c0_10, %c0_11] : memref<32x8xf32, #tpu.memory_space<vmem>>, vector<32x8xf32>
    %cst_12 = arith.constant dense<0.000000e+00> : vector<8x8xf32>
    %14 = tpu.matmul %12, %13, %cst_12 {dimension_numbers = #tpu.dot_dimension_numbers<[1], [0], [0], [1], [0, 0, 1, 1], [], []>} : vector<8x32xf32>, vector<32x8xf32>, vector<8x8xf32> -> vector<8x8xf32>
    %c0_13 = arith.constant 0 : index
    %c0_14 = arith.constant 0 : index
    %15 = vector.load %arg7[%c0_13, %c0_14] : memref<1x8xf32, #tpu.memory_space<vmem>>, vector<1x8xf32>
    %16 = vector.broadcast %15 : vector<1x8xf32> to vector<8x8xf32>
    %17 = arith.addf %14, %16 : vector<8x8xf32>
    %cst_15 = arith.constant dense<0xFF800000> : vector<8xf32>
    %18 = vector.multi_reduction <maximumf>, %17, %cst_15 [1] : vector<8x8xf32> to vector<8xf32>
    %19 = vector.shape_cast %18 : vector<8xf32> to vector<8x1xf32>
    %20 = vector.broadcast %19 : vector<8x1xf32> to vector<8x8xf32>
    %21 = arith.subf %17, %20 : vector<8x8xf32>
    %22 = math.exp %21 : vector<8x8xf32>
    %cst_16 = arith.constant dense<0.000000e+00> : vector<8xf32>
    %23 = vector.multi_reduction <add>, %22, %cst_16 [1] : vector<8x8xf32> to vector<8xf32>
    %24 = vector.shape_cast %23 : vector<8xf32> to vector<8x1xf32>
    %25 = tpu.reciprocal %24 {approx = true} : vector<8x1xf32> -> vector<8x1xf32>
    %26 = vector.broadcast %25 : vector<8x1xf32> to vector<8x8xf32>
    %27 = arith.mulf %22, %26 : vector<8x8xf32>
    %c0_17 = arith.constant 0 : index
    %c0_18 = arith.constant 0 : index
    %28 = vector.load %arg8[%c0_17, %c0_18] : memref<8x8xf32, #tpu.memory_space<vmem>>, vector<8x8xf32>
    tpu.vector_store %arg8[%c0_17, %c0_18], %27 {strides = array<i32>} : memref<8x8xf32, #tpu.memory_space<vmem>>, vector<8x8xf32>,
    return
  }
  func.func @transform_0(%arg0: i32) -> (i32, i32) {
    %c0_i32 = arith.constant 0 : i32
    %c0_i32_0 = arith.constant 0 : i32
    return %arg0, %c0_i32 : i32, i32
  }
  func.func @transform_1(%arg0: i32) -> (i32, i32) {
    %c0_i32 = arith.constant 0 : i32
    %c0_i32_0 = arith.constant 0 : i32
    %c0_i32_1 = arith.constant 0 : i32
    return %c0_i32, %c0_i32_0 : i32, i32
  }
  func.func @transform_2(%arg0: i32) -> (i32, i32) {
    %c0_i32 = arith.constant 0 : i32
    %c0_i32_0 = arith.constant 0 : i32
    %c0_i32_1 = arith.constant 0 : i32
    return %c0_i32, %c0_i32_0 : i32, i32
  }
  func.func @transform_3(%arg0: i32) -> (i32, i32) {
    %c0_i32 = arith.constant 0 : i32
    %c0_i32_0 = arith.constant 0 : i32
    %c0_i32_1 = arith.constant 0 : i32
    return %c0_i32, %c0_i32_0 : i32, i32
  }
  func.func @transform_4(%arg0: i32) -> (i32, i32) {
    %c0_i32 = arith.constant 0 : i32
    %c0_i32_0 = arith.constant 0 : i32
    %c0_i32_1 = arith.constant 0 : i32
    return %c0_i32, %c0_i32_0 : i32, i32
  }
  func.func @transform_5(%arg0: i32) -> (i32, i32) {
    %c0_i32 = arith.constant 0 : i32
    %c0_i32_0 = arith.constant 0 : i32
    %c0_i32_1 = arith.constant 0 : i32
    return %c0_i32, %c0_i32_0 : i32, i32
  }
  func.func @transform_6(%arg0: i32) -> (i32, i32) {
    %c0_i32 = arith.constant 0 : i32
    %c0_i32_0 = arith.constant 0 : i32
    %c0_i32_1 = arith.constant 0 : i32
    return %c0_i32, %c0_i32_0 : i32, i32
  }
  func.func @transform_7(%arg0: i32) -> (i32, i32) {
    %c0_i32 = arith.constant 0 : i32
    %c0_i32_0 = arith.constant 0 : i32
    return %arg0, %c0_i32 : i32, i32
  }
}

</mosaic_0001>

<llo_original>
// kernel: net_forward.1
$region0: #{net_forward.1}
  #allocation0 [shape = 'u32[]', space=smem, size = 0x4, offset = 0x4, fixed_abs, tag = 'smem constant byte address 0x4 - core index']
  #allocation1 [shape = 'u32[144,128]{1,0:T(1,128)}', space=vmem, size = 0x12000, scoped, tag = 'internal scratch']
  %s0 = inlined_call_operand.hbm [shape: f32[8,16], index: 0, kind: input, shape index: {}]
  %s1 = inlined_call_operand.vmem [shape: f32[16,32], index: 1, kind: input, shape index: {}]
  %s2 = inlined_call_operand.vmem [shape: f32[1,32], index: 2, kind: input, shape index: {}]
  %s3 = inlined_call_operand.vmem [shape: f32[32,32], index: 3, kind: input, shape index: {}]
  %s4 = inlined_call_operand.hbm [shape: f32[1,32], index: 4, kind: input, shape index: {}]
  %s5 = inlined_call_operand.vmem [shape: f32[32,8], index: 5, kind: input, shape index: {}]
  %s6 = inlined_call_operand.hbm [shape: f32[1,8], index: 6, kind: input, shape index: {}]
  %s7 = inlined_call_operand.hbm [shape: f32[8,8], index: 7, kind: output, shape index: {}]
  %s8 = sld [smem:[#allocation0]]
  $region50: #{net_forward.1} parent=0
    _
  %s10 = ssub.s32 1, %s8
  %s11 = scalar_select 0, %s10, %s8
  $region1: #{net_forward.1} parent=0
    #allocation2 [shape = 'u8[4096]{0}', space=vmem, size = 0x1000, scoped, tag = 'input window, operand 0, single buffered']
    #allocation3 [shape = 's32[1]{0}', space=sflag, size = 0x4, scoped, tag = 'scoped memory for net_forward.1']
    #allocation4 [shape = 's32[1]{0}', space=sflag, size = 0x4, scoped, tag = 'scoped memory for net_forward.1']
    #allocation5 [shape = 'u8[512]{0}', space=vmem, size = 0x400, scoped, tag = 'input window, operand 4, single buffered']
    #allocation6 [shape = 's32[1]{0}', space=sflag, size = 0x4, scoped, tag = 'scoped memory for net_forward.1']
    #allocation7 [shape = 'u8[512]{0}', space=vmem, size = 0x400, scoped, tag = 'input window, operand 6, single buffered']
    #allocation8 [shape = 'u8[4096]{0}', space=vmem, size = 0x1000, scoped, tag = 'output window, operand 0, single buffered']
    %12 = vsyncpa [#allocation3], 0
    %13 = vsyncpa [#allocation6], 0
    %14 = vsyncpa [#allocation4], 0
    // Predicated region
    $region2: #{net_forward.1} parent=1 // pred_check
      _
    $region3: #{net_forward.1} parent=1 // pred_check_branch
      %16 = sbr.rel (0) target = $region5
    $region4: #{net_forward.1} parent=1 // pred_region
      %s18 = ssub.s32 128, 128
      %19 = vsyncadd [#allocation3], %s18
      %s21 = sshll.u32 [#allocation2], 4
      %s22 = int_to_ptr.vmem [resolvable:$true] %s21
      %24 = dma.hbm_to_vmem [thread:$0]  %s0, 128, %s22, [#allocation3]
    $region5: #{net_forward.1} parent=1 // pred_fallthru
      _
    // Predicated region
    $region6: #{net_forward.1} parent=1 // pred_check
      _
    $region7: #{net_forward.1} parent=1 // pred_check_branch
      %26 = sbr.rel (0) target = $region9
    $region8: #{net_forward.1} parent=1 // pred_region
      _
    $region9: #{net_forward.1} parent=1 // pred_fallthru
      _
    // Predicated region
    $region10: #{net_forward.1} parent=1 // pred_check
      _
    $region11: #{net_forward.1} parent=1 // pred_check_branch
      %28 = sbr.rel (0) target = $region13
    $region12: #{net_forward.1} parent=1 // pred_region
      _
    $region13: #{net_forward.1} parent=1 // pred_fallthru
      _
    // Predicated region
    $region14: #{net_forward.1} parent=1 // pred_check
      _
    $region15: #{net_forward.1} parent=1 // pred_check_branch
      %30 = sbr.rel (0) target = $region17
    $region16: #{net_forward.1} parent=1 // pred_region
      _
    $region17: #{net_forward.1} parent=1 // pred_fallthru
      _
    // Predicated region
    $region18: #{net_forward.1} parent=1 // pred_check
      _
    $region19: #{net_forward.1} parent=1 // pred_check_branch
      %32 = sbr.rel (0) target = $region21
    $region20: #{net_forward.1} parent=1 // pred_region
      %s34 = ssub.s32 16, 16
      %35 = vsyncadd [#allocation6], %s34
      %s37 = sshll.u32 [#allocation5], 4
      %s38 = int_to_ptr.vmem [resolvable:$true] %s37
      %40 = dma.hbm_to_vmem [thread:$0]  %s4, 16, %s38, [#allocation6]
    $region21: #{net_forward.1} parent=1 // pred_fallthru
      _
    // Predicated region
    $region22: #{net_forward.1} parent=1 // pred_check
      _
    $region23: #{net_forward.1} parent=1 // pred_check_branch
      %42 = sbr.rel (0) target = $region25
    $region24: #{net_forward.1} parent=1 // pred_region
      _
    $region25: #{net_forward.1} parent=1 // pred_fallthru
      _
    // Predicated region
    $region26: #{net_forward.1} parent=1 // pred_check
      _
    $region27: #{net_forward.1} parent=1 // pred_check_branch
      %44 = sbr.rel (0) target = $region29
    $region28: #{net_forward.1} parent=1 // pred_region
      %s46 = ssub.s32 16, 16
      %47 = vsyncadd [#allocation6], %s46
      %s49 = sshll.u32 [#allocation7], 4
      %s50 = int_to_ptr.vmem [resolvable:$true] %s49
      %52 = dma.hbm_to_vmem [thread:$0]  %s6, 16, %s50, [#allocation6]
    $region29: #{net_forward.1} parent=1 // pred_fallthru
      _
    // Predicated region
    $region30: #{net_forward.1} parent=1 // pred_check
      _
    $region31: #{net_forward.1} parent=1 // pred_check_branch
      %54 = sbr.rel (0) target = $region33
    $region32: #{net_forward.1} parent=1 // pred_region
      %55 = dma.done [#allocation3], 128
    $region33: #{net_forward.1} parent=1 // pred_fallthru
      _
    // Predicated region
    $region34: #{net_forward.1} parent=1 // pred_check
      _
    $region35: #{net_forward.1} parent=1 // pred_check_branch
      %57 = sbr.rel (0) target = $region37
    $region36: #{net_forward.1} parent=1 // pred_region
      %58 = dma.done [#allocation6], 16
    $region37: #{net_forward.1} parent=1 // pred_fallthru
      _
    // Predicated region
    $region38: #{net_forward.1} parent=1 // pred_check
      _
    $region39: #{net_forward.1} parent=1 // pred_check_branch
      %60 = sbr.rel (0) target = $region41
    $region40: #{net_forward.1} parent=1 // pred_region
      %61 = dma.done [#allocation6], 16
    $region41: #{net_forward.1} parent=1 // pred_fallthru
      _
    %v62 = vld [vmem:[#allocation2] sm:$0xff]
    %v63 = vld [vmem:[%s1] sm:$0xff]
    %v64 = vld [vmem:[%s1 + $0x8] sm:$0xff]
    %v65 = vld [vmem:[%s2] sm:$0x1]
    %v67 = vlaneseq
    %v68 = vshrl.u32 %v67, 7
    %v69 = vsub.s32 0, %v68
    %v70 = vrot.slane %v65, %v69
    %vm72 = vcmask 130048
    %v74 = vsel %vm72, %v62, 0
    %76 = vmatprep.subr.mxu0 0.0
    %77 = vmatpush1.msra.mxu0 0.0
    %78 = vmatprep.subr.mxu0 0.0
    %79 = vmatpush1.msra.mxu0 0.0
    %80 = vmatprep.subr.mxu0 0.0
    %81 = vmatpush1.msra.mxu0 0.0
    %82 = vmatprep.subr.mxu0 0.0
    %83 = vmatpush1.msra.mxu0 0.0
    %84 = vmatprep.subr.mxu0 0.0
    %85 = vmatpush1.msra.mxu0 0.0
    %86 = vmatprep.subr.mxu0 0.0
    %87 = vmatpush1.msra.mxu0 0.0
    %88 = vmatprep.subr.mxu0 0.0
    %89 = vmatpush1.msra.mxu0 0.0
    %90 = vmatprep.subr.mxu0 0.0
    %91 = vmatpush1.msra.mxu0 0.0
    %92 = vmatprep.subr.mxu0 0.0
    %93 = vmatpush1.msra.mxu0 0.0
    %94 = vmatprep.subr.mxu0 0.0
    %95 = vmatpush1.msra.mxu0 0.0
    %96 = vmatprep.subr.mxu0 0.0
    %97 = vmatpush1.msra.mxu0 0.0
    %98 = vmatprep.subr.mxu0 0.0
    %99 = vmatpush1.msra.mxu0 0.0
    %100 = vmatprep.subr.mxu0 0.0
    %101 = vmatpush1.msra.mxu0 0.0
    %102 = vmatprep.subr.mxu0 0.0
    %103 = vmatpush1.msra.mxu0 0.0
    %104 = vmatprep.subr.mxu0 0.0
    %105 = vmatpush1.msra.mxu0 %v64
    %106 = vmatprep.subr.mxu0 0.0
    %107 = vmatpush1.msra.mxu0 %v63
    %108 = vmatprep.subr.mxu0 0.0
    %109 = vmatpush2.msra.mxu0 0.0
    %110 = vmatprep.subr.mxu0 0.0
    %111 = vmatpush2.msra.mxu0 0.0
    %112 = vmatprep.subr.mxu0 0.0
    %113 = vmatpush2.msra.mxu0 0.0
    %114 = vmatprep.subr.mxu0 0.0
    %115 = vmatpush2.msra.mxu0 0.0
    %116 = vmatprep.subr.mxu0 0.0
    %117 = vmatpush2.msra.mxu0 0.0
    %118 = vmatprep.subr.mxu0 0.0
    %119 = vmatpush2.msra.mxu0 0.0
    %120 = vmatprep.subr.mxu0 0.0
    %121 = vmatpush2.msra.mxu0 0.0
    %122 = vmatprep.subr.mxu0 0.0
    %123 = vmatpush2.msra.mxu0 0.0
    %124 = vmatprep.subr.mxu0 0.0
    %125 = vmatpush2.msra.mxu0 0.0
    %126 = vmatprep.subr.mxu0 0.0
    %127 = vmatpush2.msra.mxu0 0.0
    %128 = vmatprep.subr.mxu0 0.0
    %129 = vmatpush2.msra.mxu0 0.0
    %130 = vmatprep.subr.mxu0 0.0
    %131 = vmatpush2.msra.mxu0 0.0
    %132 = vmatprep.subr.mxu0 0.0
    %133 = vmatpush2.msra.mxu0 0.0
    %134 = vmatprep.subr.mxu0 0.0
    %135 = vmatpush2.msra.mxu0 0.0
    %136 = vmatprep.subr.mxu0 0.0
    %137 = vmatpush2.msra.mxu0 0.0
    %138 = vmatprep.subr.mxu0 0.0
    %139 = vmatpush2.msra.mxu0 0.0
    %140 = vmatprep.mubr.f32.mxu0 0.0
    %141 = vmatmul.mubr.f32.gmra.mxu0 %v74
    %v142 = vpop.f32.mrf.mxu0
    %v143 = vadd.f32 %v70, %v142
    %v144 = vpop.f32.mrf.mxu0
    %145 = vdwg.mxu0
    %v146 = vtanh.pop %v143
    %v147 = vld [vmem:[%s3] sm:$0xff]
    %v148 = vld [vmem:[%s3 + $0x8] sm:$0xff]
    %v149 = vld [vmem:[%s3 + $0x10] sm:$0xff]
    %v150 = vld [vmem:[%s3 + $0x18] sm:$0xff]
    %v151 = vld [vmem:[#allocation5] sm:$0x1]
    %v153 = vlaneseq
    %v154 = vshrl.u32 %v153, 7
    %v155 = vsub.s32 0, %v154
    %v156 = vrot.slane %v151, %v155
    %vm158 = vcmask 261120
    %v160 = vsel %vm158, %v146, 0
    %162 = vmatprep.subr.mxu0 0.0
    %163 = vmatpush1.msra.mxu0 0.0
    %164 = vmatprep.subr.mxu0 0.0
    %165 = vmatpush1.msra.mxu0 0.0
    %166 = vmatprep.subr.mxu0 0.0
    %167 = vmatpush1.msra.mxu0 0.0
    %168 = vmatprep.subr.mxu0 0.0
    %169 = vmatpush1.msra.mxu0 0.0
    %170 = vmatprep.subr.mxu0 0.0
    %171 = vmatpush1.msra.mxu0 0.0
    %172 = vmatprep.subr.mxu0 0.0
    %173 = vmatpush1.msra.mxu0 0.0
    %174 = vmatprep.subr.mxu0 0.0
    %175 = vmatpush1.msra.mxu0 0.0
    %176 = vmatprep.subr.mxu0 0.0
    %177 = vmatpush1.msra.mxu0 0.0
    %178 = vmatprep.subr.mxu0 0.0
    %179 = vmatpush1.msra.mxu0 0.0
    %180 = vmatprep.subr.mxu0 0.0
    %181 = vmatpush1.msra.mxu0 0.0
    %182 = vmatprep.subr.mxu0 0.0
    %183 = vmatpush1.msra.mxu0 0.0
    %184 = vmatprep.subr.mxu0 0.0
    %185 = vmatpush1.msra.mxu0 0.0
    %186 = vmatprep.subr.mxu0 0.0
    %187 = vmatpush1.msra.mxu0 %v150
    %188 = vmatprep.subr.mxu0 0.0
    %189 = vmatpush1.msra.mxu0 %v149
    %190 = vmatprep.subr.mxu0 0.0
    %191 = vmatpush1.msra.mxu0 %v148
    %192 = vmatprep.subr.mxu0 0.0
    %193 = vmatpush1.msra.mxu0 %v147
    %194 = vmatprep.subr.mxu0 0.0
    %195 = vmatpush2.msra.mxu0 0.0
    %196 = vmatprep.subr.mxu0 0.0
    %197 = vmatpush2.msra.mxu0 0.0
    %198 = vmatprep.subr.mxu0 0.0
    %199 = vmatpush2.msra.mxu0 0.0
    %200 = vmatprep.subr.mxu0 0.0
    %201 = vmatpush2.msra.mxu0 0.0
    %202 = vmatprep.subr.mxu0 0.0
    %203 = vmatpush2.msra.mxu0 0.0
    %204 = vmatprep.subr.mxu0 0.0
    %205 = vmatpush2.msra.mxu0 0.0
    %206 = vmatprep.subr.mxu0 0.0
    %207 = vmatpush2.msra.mxu0 0.0
    %208 = vmatprep.subr.mxu0 0.0
    %209 = vmatpush2.msra.mxu0 0.0
    %210 = vmatprep.subr.mxu0 0.0
    %211 = vmatpush2.msra.mxu0 0.0
    %212 = vmatprep.subr.mxu0 0.0
    %213 = vmatpush2.msra.mxu0 0.0
    %214 = vmatprep.subr.mxu0 0.0
    %215 = vmatpush2.msra.mxu0 0.0
    %216 = vmatprep.subr.mxu0 0.0
    %217 = vmatpush2.msra.mxu0 0.0
    %218 = vmatprep.subr.mxu0 0.0
    %219 = vmatpush2.msra.mxu0 0.0
    %220 = vmatprep.subr.mxu0 0.0
    %221 = vmatpush2.msra.mxu0 0.0
    %222 = vmatprep.subr.mxu0 0.0
    %223 = vmatpush2.msra.mxu0 0.0
    %224 = vmatprep.subr.mxu0 0.0
    %225 = vmatpush2.msra.mxu0 0.0
    %226 = vmatprep.mubr.f32.mxu0 0.0
    %227 = vmatmul.mubr.f32.gmra.mxu0 %v160
    %v228 = vpop.f32.mrf.mxu0
    %v229 = vadd.f32 %v156, %v228
    %v230 = vpop.f32.mrf.mxu0
    %231 = vdwg.mxu0
    %v232 = vtanh.pop %v229
    %v233 = vld [vmem:[%s5] sm:$0xff]
    %v234 = vld [vmem:[%s5 + $0x8] sm:$0xff]
    %v235 = vld [vmem:[%s5 + $0x10] sm:$0xff]
    %v236 = vld [vmem:[%s5 + $0x18] sm:$0xff]
    %v237 = vld [vmem:[#allocation7] sm:$0x1]
    %v239 = vlaneseq
    %v240 = vshrl.u32 %v239, 7
    %v241 = vsub.s32 0, %v240
    %v242 = vrot.slane %v237, %v241
    %v245 = vsel %vm158, %v232, 0
    %247 = vmatprep.subr.mxu0 0.0
    %248 = vmatpush1.msra.mxu0 0.0
    %249 = vmatprep.subr.mxu0 0.0
    %250 = vmatpush1.msra.mxu0 0.0
    %251 = vmatprep.subr.mxu0 0.0
    %252 = vmatpush1.msra.mxu0 0.0
    %253 = vmatprep.subr.mxu0 0.0
    %254 = vmatpush1.msra.mxu0 0.0
    %255 = vmatprep.subr.mxu0 0.0
    %256 = vmatpush1.msra.mxu0 0.0
    %257 = vmatprep.subr.mxu0 0.0
    %258 = vmatpush1.msra.mxu0 0.0
    %259 = vmatprep.subr.mxu0 0.0
    %260 = vmatpush1.msra.mxu0 0.0
    %261 = vmatprep.subr.mxu0 0.0
    %262 = vmatpush1.msra.mxu0 0.0
    %263 = vmatprep.subr.mxu0 0.0
    %264 = vmatpush1.msra.mxu0 0.0
    %265 = vmatprep.subr.mxu0 0.0
    %266 = vmatpush1.msra.mxu0 0.0
    %267 = vmatprep.subr.mxu0 0.0
    %268 = vmatpush1.msra.mxu0 0.0
    %269 = vmatprep.subr.mxu0 0.0
    %270 = vmatpush1.msra.mxu0 0.0
    %271 = vmatprep.subr.mxu0 0.0
    %272 = vmatpush1.msra.mxu0 %v236
    %273 = vmatprep.subr.mxu0 0.0
    %274 = vmatpush1.msra.mxu0 %v235
    %275 = vmatprep.subr.mxu0 0.0
    %276 = vmatpush1.msra.mxu0 %v234
    %277 = vmatprep.subr.mxu0 0.0
    %278 = vmatpush1.msra.mxu0 %v233
    %279 = vmatprep.subr.mxu0 0.0
    %280 = vmatpush2.msra.mxu0 0.0
    %281 = vmatprep.subr.mxu0 0.0
    %282 = vmatpush2.msra.mxu0 0.0
    %283 = vmatprep.subr.mxu0 0.0
    %284 = vmatpush2.msra.mxu0 0.0
    %285 = vmatprep.subr.mxu0 0.0
    %286 = vmatpush2.msra.mxu0 0.0
    %287 = vmatprep.subr.mxu0 0.0
    %288 = vmatpush2.msra.mxu0 0.0
    %289 = vmatprep.subr.mxu0 0.0
    %290 = vmatpush2.msra.mxu0 0.0
    %291 = vmatprep.subr.mxu0 0.0
    %292 = vmatpush2.msra.mxu0 0.0
    %293 = vmatprep.subr.mxu0 0.0
    %294 = vmatpush2.msra.mxu0 0.0
    %295 = vmatprep.subr.mxu0 0.0
    %296 = vmatpush2.msra.mxu0 0.0
    %297 = vmatprep.subr.mxu0 0.0
    %298 = vmatpush2.msra.mxu0 0.0
    %299 = vmatprep.subr.mxu0 0.0
    %300 = vmatpush2.msra.mxu0 0.0
    %301 = vmatprep.subr.mxu0 0.0
    %302 = vmatpush2.msra.mxu0 0.0
    %303 = vmatprep.subr.mxu0 0.0
    %304 = vmatpush2.msra.mxu0 0.0
    %305 = vmatprep.subr.mxu0 0.0
    %306 = vmatpush2.msra.mxu0 0.0
    %307 = vmatprep.subr.mxu0 0.0
    %308 = vmatpush2.msra.mxu0 0.0
    %309 = vmatprep.subr.mxu0 0.0
    %310 = vmatpush2.msra.mxu0 0.0
    %311 = vmatprep.mubr.f32.mxu0 0.0
    %312 = vmatmul.mubr.f32.gmra.mxu0 %v245
    %v313 = vpop.f32.mrf.mxu0
    %v314 = vadd.f32 %v242, %v313
    %v315 = vpop.f32.mrf.mxu0
    %316 = vdwg.mxu0
    %vm317 = vcmask 64512
    %v318 = vsel %vm317, %v314, -inf
    %319 = vmax.xlane.f32.xlu0 %v318
    %v320 = vpop.xlane.xlu0 %319
    %v321 = vsub.f32 %v314, %v320
    %v322 = vmul.f32 %v321, 1.442695
    %v323 = vpow.pop %v322
    %v324 = vsel %vm317, %v323, 0.0
    %325 = vadd.xlane.f32.xlu0 %v324
    %v326 = vpop.xlane.xlu0 %325
    %v327 = vrcp.pop %v326
    %v328 = vmul.f32 %v323, %v327
    %329 = vst.msk [vmem:[#allocation8] sm:$0xff] %vm317, %v328
    // Predicated region
    $region42: #{net_forward.1} parent=1 // pred_check
      _
    $region43: #{net_forward.1} parent=1 // pred_check_branch
      %331 = sbr.rel (0) target = $region45
    $region44: #{net_forward.1} parent=1 // pred_region
      %s333 = ssub.s32 128, 128
      %334 = vsyncadd [#allocation4], %s333
      %s336 = sshll.u32 [#allocation8], 4
      %s337 = int_to_ptr.vmem [resolvable:$true] %s336
      %339 = dma.vmem_to_hbm [thread:$0]  %s337, 128, %s7, [#allocation4]
    $region45: #{net_forward.1} parent=1 // pred_fallthru
      _
    // Predicated region
    $region46: #{net_forward.1} parent=1 // pred_check
      _
    $region47: #{net_forward.1} parent=1 // pred_check_branch
      %341 = sbr.rel (0) target = $region49
    $region48: #{net_forward.1} parent=1 // pred_region
      %342 = dma.done [#allocation4], 128
    $region49: #{net_forward.1} parent=1 // pred_fallthru
      _
    %343 = vsyncpa [#allocation3], 1
    %344 = vsyncpa [#allocation6], 1
    %345 = vsyncpa [#allocation4], 1

</llo_original>
